<compile_context>
chip_gen: v7x
topology: tpu7x:2x2x1
jax: 0.10.0
libtpu: 0.0.40
codegen_flags: <defaults>
</compile_context>

<pallas_src>
import functools
import math

import jax
import jax.numpy as jnp
import numpy as np
from jax import lax
from jax.experimental import pallas as pl
from jax.experimental.pallas import tpu as pltpu


# ---------------------------------------------------------------------------
# Kernel 1: fused projection
#   out_q  = h @ Wq_all  + bq_all   ->  [N, 2*H*D]  (group-major [Q_g | Q2_g])
#   out_kv = h @ Wkv_all + bkv_all  ->  [N, 3*H*D]  (group-major [K_g|K2_g|V_g])
# ---------------------------------------------------------------------------
def _proj_kernel(x_ref, wq_ref, bq_ref, wkv_ref, bkv_ref, oq_ref, okv_ref):
    x = x_ref[...]
    oq_ref[...] = (
        jnp.dot(x, wq_ref[...], preferred_element_type=jnp.float32) + bq_ref[...]
    ).astype(oq_ref.dtype)
    okv_ref[...] = (
        jnp.dot(x, wkv_ref[...], preferred_element_type=jnp.float32) + bkv_ref[...]
    ).astype(okv_ref.dtype)


# ---------------------------------------------------------------------------
# Kernel 2: tiled attention over (head_group g, query tile qi, key tile ki)
#   q index = destination node (output row), k index = source node.
#   cls_ref is the int8 edge-class matrix cls[dst, src]: 0 fake, 1 real, 2 diag.
#   qq_ref holds [Q | Q2] (lane-concat), kv_ref holds [K | K2 | V] for group g.
# ---------------------------------------------------------------------------
def _attn_kernel(cls_ref, qq_ref, kv_ref, out_ref, acc_ref, z_ref,
                 *, gamma, g_heads, d):
    ki = pl.program_id(2)

    @pl.when(ki == 0)
    def _():
        acc_ref[...] = jnp.zeros_like(acc_ref)
        z_ref[...] = jnp.zeros_like(z_ref)

    f32 = jnp.float32
    cls = cls_ref[...]                       # int8 (TQ, TK)
    is_real = cls == 1
    inv_g1 = 1.0 / (gamma + 1.0)
    # Combined coefficient: 0 on diagonal, 1/(g+1) on real edges, g/(g+1) else.
    coef = jnp.where(cls == 2, 0.0,
                     jnp.where(is_real, inv_g1, gamma * inv_g1)).astype(f32)

    gd = g_heads * d
    dn = (((1,), (1,)), ((), ()))            # contract the last dims (q.kT)

    # Unrolled over the (small) head group: per-head bf16 matmuls, f32 accumulate.
    for j in range(g_heads):
        q = qq_ref[:, j * d:(j + 1) * d]                     # (TQ, D) bf16
        q2 = qq_ref[:, gd + j * d: gd + (j + 1) * d]
        k = kv_ref[:, j * d:(j + 1) * d]                     # (TK, D) bf16
        k2 = kv_ref[:, gd + j * d: gd + (j + 1) * d]
        v = kv_ref[:, 2 * gd + j * d: 2 * gd + (j + 1) * d]

        # 1/sqrt(D) is already folded into the Q / Q2 weights+biases.
        s_real = lax.dot_general(q, k, dn, preferred_element_type=f32)
        s_fake = lax.dot_general(q2, k2, dn, preferred_element_type=f32)

        # Select the score first, exponentiate ONCE.
        s = jnp.where(is_real, s_real, s_fake)               # (TQ, TK) f32
        w = jnp.exp(jnp.clip(s, -5.0, 5.0)) * coef

        acc_ref[j] += jnp.dot(w.astype(v.dtype), v, preferred_element_type=f32)
        z_ref[j] += jnp.sum(w, axis=-1, keepdims=True)

    @pl.when(ki == pl.num_programs(2) - 1)
    def _():
        for j in range(g_heads):
            inv = pl.reciprocal(z_ref[j] + 1e-6, approx=True)        # (TQ, 1)
            out_ref[:, j * d:(j + 1) * d] = (acc_ref[j] * inv).astype(out_ref.dtype)


# ---------------------------------------------------------------------------
# Wrapper
# ---------------------------------------------------------------------------
def _heads_per_group(num_heads, out_dim):
    # Cap G*D at 128-256 lanes and keep the output slab lane-aligned.
    for g in range(num_heads, 0, -1):
        if num_heads % g == 0 and g * out_dim <= 256 and (g * out_dim) % 128 == 0:
            return g
    # Fallback: one group spanning all heads (full-width blocks are always legal).
    return num_heads


def multi_head_attention(h, adj, params, *, gamma, num_heads, out_dim,
                         tq=256, tk=256):
    N, F = h.shape
    H, D = num_heads, out_dim
    assert N % 128 == 0, "N must be a multiple of 128 (no ragged-tail path yet)"

    G = _heads_per_group(H, D)
    ngroups = H // G
    GD = G * D

    # ---- tile selection -----------------------------------------------------
    tq = min(tq, N)
    while N % tq:
        tq //= 2
    tk = min(tk, N)
    while N % tk:
        tk //= 2
    # Keep >= 2 iterations on the parallel grid axes for v7x megacore.
    while (ngroups * (N // tq) < 2 and tq > 128 and tq % 2 == 0
           and N % (tq // 2) == 0):
        tq //= 2

    # ---- fused projection weights (group-major column layout) ----------------
    scale = 1.0 / math.sqrt(D)
    f32 = jnp.float32
    Wq = params["Q_w"].T.astype(f32) * scale      # [F, H*D], scale folded in
    Wq2 = params["Q2_w"].T.astype(f32) * scale
    Wk = params["K_w"].T.astype(f32)
    Wk2 = params["K2_w"].T.astype(f32)
    Wv = params["V_w"].T.astype(f32)
    bq = params["Q_b"].astype(f32) * scale
    bq2 = params["Q2_b"].astype(f32) * scale
    bk = params["K_b"].astype(f32)
    bk2 = params["K2_b"].astype(f32)
    bv = params["V_b"].astype(f32)

    qcols, kvcols, bqcols, bkvcols = [], [], [], []
    for g in range(ngroups):
        sl = slice(g * GD, (g + 1) * GD)
        qcols += [Wq[:, sl], Wq2[:, sl]]
        kvcols += [Wk[:, sl], Wk2[:, sl], Wv[:, sl]]
        bqcols += [bq[sl], bq2[sl]]
        bkvcols += [bk[sl], bk2[sl], bv[sl]]
    w_q = jnp.concatenate(qcols, axis=1).astype(jnp.bfloat16)     # [F, 2*H*D]
    w_kv = jnp.concatenate(kvcols, axis=1).astype(jnp.bfloat16)   # [F, 3*H*D]
    b_q = jnp.concatenate(bqcols)[None, :]                        # [1, 2*H*D] f32
    b_kv = jnp.concatenate(bkvcols)[None, :]                      # [1, 3*H*D] f32

    tile_n = min(512, N)
    while N % tile_n:
        tile_n //= 2

    proj_q, proj_kv = pl.pallas_call(
        _proj_kernel,
        out_shape=(jax.ShapeDtypeStruct((N, 2 * H * D), jnp.bfloat16),
                   jax.ShapeDtypeStruct((N, 3 * H * D), jnp.bfloat16)),
        grid=(N // tile_n,),
        in_specs=[
            pl.BlockSpec((tile_n, F), lambda i: (i, 0)),
            pl.BlockSpec((F, 2 * H * D), lambda i: (0, 0)),
            pl.BlockSpec((1, 2 * H * D), lambda i: (0, 0)),
            pl.BlockSpec((F, 3 * H * D), lambda i: (0, 0)),
            pl.BlockSpec((1, 3 * H * D), lambda i: (0, 0)),
        ],
        out_specs=(pl.BlockSpec((tile_n, 2 * H * D), lambda i: (i, 0)),
                   pl.BlockSpec((tile_n, 3 * H * D), lambda i: (i, 0))),
        compiler_params=pltpu.CompilerParams(dimension_semantics=("parallel",)),
    )(h.astype(jnp.bfloat16), w_q, b_q, w_kv, b_kv)

    # ---- int8 edge-class matrix (dst-major): 2 = diagonal, 1 = real, 0 = fake --
    real_t = (adj > 0.5).T                       # adj[src, dst] -> [dst, src]
    eye = jnp.eye(N, dtype=bool)
    cls = jnp.where(eye, jnp.int8(2), jnp.where(real_t, jnp.int8(1), jnp.int8(0)))

    # ---- VMEM budget computed from tiles (don't hard-code 64 MiB; v7x has 64) --
    bytes_in = tq * tk + tq * (2 * GD) * 2 + tk * (3 * GD) * 2
    bytes_out = tq * GD * 4
    bytes_scr = G * tq * D * 4 + G * tq * 4
    vmem_limit = int(min(max(6 * (2 * (bytes_in + bytes_out) + bytes_scr),
                             16 * 1024 * 1024), 32 * 1024 * 1024))

    kernel = functools.partial(_attn_kernel, gamma=float(gamma), g_heads=G, d=D)

    out = pl.pallas_call(
        kernel,
        out_shape=jax.ShapeDtypeStruct((N, H * D), jnp.float32),
        grid=(ngroups, N // tq, N // tk),
        in_specs=[
            pl.BlockSpec((tq, tk), lambda g, qi, ki: (qi, ki)),        # cls (int8)
            pl.BlockSpec((tq, 2 * GD), lambda g, qi, ki: (qi, g)),     # [Q | Q2]
            pl.BlockSpec((tk, 3 * GD), lambda g, qi, ki: (ki, g)),     # [K | K2 | V]
        ],
        out_specs=pl.BlockSpec((tq, GD), lambda g, qi, ki: (qi, g)),
        scratch_shapes=[
            pltpu.VMEM((G, tq, D), jnp.float32),   # wV accumulator
            pltpu.VMEM((G, tq, 1), jnp.float32),   # z accumulator
        ],
        compiler_params=pltpu.CompilerParams(
            dimension_semantics=("parallel", "parallel", "arbitrary"),
            vmem_limit_bytes=vmem_limit,
        ),
    )(cls, proj_q, proj_kv)

    return out.reshape(N, H, D)                 # == PyTorch h_out [N, H, D]


# ---------------------------------------------------------------------------
# Plain-JAX (f32) mirror of the PyTorch forward() for validation.
# ---------------------------------------------------------------------------
def reference(h, adj, params, *, gamma, num_heads, out_dim):
    N, F = h.shape
    H, D = num_heads, out_dim

    def lin(w, b):
        return h @ w.T + b

    Qh = lin(params["Q_w"], params["Q_b"]).reshape(N, H, D)
    Kh = lin(params["K_w"], params["K_b"]).reshape(N, H, D)
    Q2h = lin(params["Q2_w"], params["Q2_b"]).reshape(N, H, D)
    K2h = lin(params["K2_w"], params["K2_b"]).reshape(N, H, D)
    Vh = lin(params["V_w"], params["V_b"]).reshape(N, H, D)

    wr = jnp.einsum('ihd,jhd->ijh', Kh, Qh) / math.sqrt(D)
    wf = jnp.einsum('ihd,jhd->ijh', K2h, Q2h) / math.sqrt(D)
    wre = jnp.exp(jnp.clip(wr, -5.0, 5.0)) / (gamma + 1.0)
    wfe = gamma * jnp.exp(jnp.clip(wf, -5.0, 5.0)) / (gamma + 1.0)
    mask = (adj > 0.5)[:, :, None]
    w = jnp.where(mask, wre, wfe)
    eye = jnp.eye(N, dtype=bool)[:, :, None]
    w = jnp.where(eye, 0.0, w)
    out = jnp.einsum('ijh,ihd->jhd', w, Vh)
    z = jnp.sum(w, axis=0)[:, :, None]
    return out / (z + 1e-6)


if __name__ == "__main__":
    # Small, module-consistent shapes: N graph nodes, in_dim F, H heads of dim D.
    # H*D = 128 (one lane-dense head group); N spans multiple tiles so the
    # accumulation / diagonal-masking / megacore-split paths are exercised.
    N, F, H, D = 256, 64, 4, 32
    gamma = 1.5

    key = jax.random.PRNGKey(0)
    keys = jax.random.split(key, 12)

    h = jax.random.normal(keys[0], (N, F), dtype=jnp.float32)
    # Deterministic random "real edge" mask, indexed [src, dst].
    adj = (jax.random.uniform(keys[1], (N, N)) < 0.3).astype(jnp.float32)

    init = 1.0 / math.sqrt(F)
    params = {
        "Q_w": jax.random.normal(keys[2], (H * D, F), jnp.float32) * init,
        "Q_b": jax.random.normal(keys[3], (H * D,), jnp.float32) * init,
        "K_w": jax.random.normal(keys[4], (H * D, F), jnp.float32) * init,
        "K_b": jax.random.normal(keys[5], (H * D,), jnp.float32) * init,
        "Q2_w": jax.random.normal(keys[6], (H * D, F), jnp.float32) * init,
        "Q2_b": jax.random.normal(keys[7], (H * D,), jnp.float32) * init,
        "K2_w": jax.random.normal(keys[8], (H * D, F), jnp.float32) * init,
        "K2_b": jax.random.normal(keys[9], (H * D,), jnp.float32) * init,
        "V_w": jax.random.normal(keys[10], (H * D, F), jnp.float32) * init,
        "V_b": jax.random.normal(keys[11], (H * D,), jnp.float32) * init,
    }

    h_out = multi_head_attention(h, adj, params, gamma=gamma,
                                 num_heads=H, out_dim=D)
    h_out = jax.block_until_ready(h_out)

    ref = reference(h, adj, params, gamma=gamma, num_heads=H, out_dim=D)
    # Tolerance sized for bf16 MXU inputs (f32 accumulation); catches any
    # masking / selection / normalization logic error by a wide margin.
    np.testing.assert_allclose(np.asarray(h_out), np.asarray(ref),
                               rtol=5e-2, atol=5e-2)
    assert h_out.shape == (N, H, D)

    print("KERNEL_OK")
</pallas_src>

<mosaic_0001>
module attributes {stable_mosaic.version = 11 : i64} {
  func.func @_proj_kernel(%arg0: i32, %arg1: memref<256x64xbf16, #tpu.memory_space<vmem>>, %arg2: memref<64x256xbf16, #tpu.memory_space<vmem>>, %arg3: memref<1x256xf32, #tpu.memory_space<vmem>>, %arg4: memref<64x384xbf16, #tpu.memory_space<vmem>>, %arg5: memref<1x384xf32, #tpu.memory_space<vmem>>, %arg6: memref<256x256xbf16, #tpu.memory_space<vmem>>, %arg7: memref<256x384xbf16, #tpu.memory_space<vmem>>) attributes {dimension_semantics = [#tpu.dimension_semantics<parallel>], iteration_bounds = array<i64: 1>, scalar_prefetch = 0 : i64, scratch_operands = 0 : i64, tpu.core_type = #tpu.core_type<tc>, window_params = [{transform_indices = @transform_0, window_bounds = array<i64: 256, 64>}, {pipeline_mode = #tpu.pipeline_mode<synchronous>, transform_indices = @transform_1, window_bounds = array<i64: 64, 256>}, {pipeline_mode = #tpu.pipeline_mode<synchronous>, transform_indices = @transform_2, window_bounds = array<i64: 1, 256>}, {pipeline_mode = #tpu.pipeline_mode<synchronous>, transform_indices = @transform_3, window_bounds = array<i64: 64, 384>}, {pipeline_mode = #tpu.pipeline_mode<synchronous>, transform_indices = @transform_4, window_bounds = array<i64: 1, 384>}, {transform_indices = @transform_5, window_bounds = array<i64: 256, 256>}, {transform_indices = @transform_6, window_bounds = array<i64: 256, 384>}]} {
    %c0 = arith.constant 0 : index
    %c0_0 = arith.constant 0 : index
    %0 = vector.load %arg1[%c0, %c0_0] : memref<256x64xbf16, #tpu.memory_space<vmem>>, vector<256x64xbf16>
    %c0_1 = arith.constant 0 : index
    %c0_2 = arith.constant 0 : index
    %1 = vector.load %arg2[%c0_1, %c0_2] : memref<64x256xbf16, #tpu.memory_space<vmem>>, vector<64x256xbf16>
    %cst = arith.constant dense<0.000000e+00> : vector<256x256xf32>
    %2 = tpu.matmul %0, %1, %cst {dimension_numbers = #tpu.dot_dimension_numbers<[1], [0], [0], [1], [0, 0, 1, 1], [], []>} : vector<256x64xbf16>, vector<64x256xbf16>, vector<256x256xf32> -> vector<256x256xf32>
    %c0_3 = arith.constant 0 : index
    %c0_4 = arith.constant 0 : index
    %3 = vector.load %arg3[%c0_3, %c0_4] : memref<1x256xf32, #tpu.memory_space<vmem>>, vector<1x256xf32>
    %4 = vector.broadcast %3 : vector<1x256xf32> to vector<256x256xf32>
    %5 = arith.addf %2, %4 : vector<256x256xf32>
    %6 = arith.truncf %5 : vector<256x256xf32> to vector<256x256xbf16>
    %c0_5 = arith.constant 0 : index
    %c0_6 = arith.constant 0 : index
    %7 = vector.load %arg6[%c0_5, %c0_6] : memref<256x256xbf16, #tpu.memory_space<vmem>>, vector<256x256xbf16>
    tpu.vector_store %arg6[%c0_5, %c0_6], %6 {strides = array<i32>} : memref<256x256xbf16, #tpu.memory_space<vmem>>, vector<256x256xbf16>,
    %c0_7 = arith.constant 0 : index
    %c0_8 = arith.constant 0 : index
    %8 = vector.load %arg4[%c0_7, %c0_8] : memref<64x384xbf16, #tpu.memory_space<vmem>>, vector<64x384xbf16>
    %cst_9 = arith.constant dense<0.000000e+00> : vector<256x384xf32>
    %9 = tpu.matmul %0, %8, %cst_9 {dimension_numbers = #tpu.dot_dimension_numbers<[1], [0], [0], [1], [0, 0, 1, 1], [], []>} : vector<256x64xbf16>, vector<64x384xbf16>, vector<256x384xf32> -> vector<256x384xf32>
    %c0_10 = arith.constant 0 : index
    %c0_11 = arith.constant 0 : index
    %10 = vector.load %arg5[%c0_10, %c0_11] : memref<1x384xf32, #tpu.memory_space<vmem>>, vector<1x384xf32>
    %11 = vector.broadcast %10 : vector<1x384xf32> to vector<256x384xf32>
    %12 = arith.addf %9, %11 : vector<256x384xf32>
    %13 = arith.truncf %12 : vector<256x384xf32> to vector<256x384xbf16>
    %c0_12 = arith.constant 0 : index
    %c0_13 = arith.constant 0 : index
    %14 = vector.load %arg7[%c0_12, %c0_13] : memref<256x384xbf16, #tpu.memory_space<vmem>>, vector<256x384xbf16>
    tpu.vector_store %arg7[%c0_12, %c0_13], %13 {strides = array<i32>} : memref<256x384xbf16, #tpu.memory_space<vmem>>, vector<256x384xbf16>,
    return
  }
  func.func @transform_0(%arg0: i32) -> (i32, i32) {
    %c0_i32 = arith.constant 0 : i32
    %c0_i32_0 = arith.constant 0 : i32
    return %arg0, %c0_i32 : i32, i32
  }
  func.func @transform_1(%arg0: i32) -> (i32, i32) {
    %c0_i32 = arith.constant 0 : i32
    %c0_i32_0 = arith.constant 0 : i32
    %c0_i32_1 = arith.constant 0 : i32
    return %c0_i32, %c0_i32_0 : i32, i32
  }
  func.func @transform_2(%arg0: i32) -> (i32, i32) {
    %c0_i32 = arith.constant 0 : i32
    %c0_i32_0 = arith.constant 0 : i32
    %c0_i32_1 = arith.constant 0 : i32
    return %c0_i32, %c0_i32_0 : i32, i32
  }
  func.func @transform_3(%arg0: i32) -> (i32, i32) {
    %c0_i32 = arith.constant 0 : i32
    %c0_i32_0 = arith.constant 0 : i32
    %c0_i32_1 = arith.constant 0 : i32
    return %c0_i32, %c0_i32_0 : i32, i32
  }
  func.func @transform_4(%arg0: i32) -> (i32, i32) {
    %c0_i32 = arith.constant 0 : i32
    %c0_i32_0 = arith.constant 0 : i32
    %c0_i32_1 = arith.constant 0 : i32
    return %c0_i32, %c0_i32_0 : i32, i32
  }
  func.func @transform_5(%arg0: i32) -> (i32, i32) {
    %c0_i32 = arith.constant 0 : i32
    %c0_i32_0 = arith.constant 0 : i32
    return %arg0, %c0_i32 : i32, i32
  }
  func.func @transform_6(%arg0: i32) -> (i32, i32) {
    %c0_i32 = arith.constant 0 : i32
    %c0_i32_0 = arith.constant 0 : i32
    return %arg0, %c0_i32 : i32, i32
  }
}

</mosaic_0001>

<llo_original>
// kernel: tpu_custom_call.1
$region0: #{tpu_custom_call.1}
  #allocation0 [shape = 'u32[]', space=smem, size = 0x4, offset = 0x4, fixed_abs, tag = 'smem constant byte address 0x4 - core index']
  #allocation1 [shape = 'u32[144,128]{1,0:T(1,128)}', space=vmem, size = 0x12000, scoped, tag = 'internal scratch']
  %s0 = inlined_call_operand.vmem [shape: bf16[256,64], index: 0, kind: input, shape index: {}]
  %s1 = inlined_call_operand.vmem [shape: bf16[64,256], index: 1, kind: input, shape index: {}]
  %s2 = inlined_call_operand.vmem [shape: f32[1,256], index: 2, kind: input, shape index: {}]
  %s3 = inlined_call_operand.vmem [shape: bf16[64,384], index: 3, kind: input, shape index: {}]
  %s4 = inlined_call_operand.vmem [shape: f32[1,384], index: 4, kind: input, shape index: {}]
  %s5 = inlined_call_operand.hbm [shape: bf16[256,256], index: 5, kind: output, shape index: {0}]
  %s6 = inlined_call_operand.hbm [shape: bf16[256,384], index: 6, kind: output, shape index: {1}]
  %7 = xla_tuple %s5, %s6
  %s8 = sld [smem:[#allocation0]]
  $region38: #{tpu_custom_call.1} parent=0
    _
  %s10 = ssub.s32 1, %s8
  %s11 = scalar_select 0, %s10, %s8
  $region1: #{tpu_custom_call.1} parent=0
    #allocation2 [shape = 'u8[131072]{0}', space=vmem, size = 0x20000, scoped, tag = 'output window, operand 0, single buffered']
    #allocation3 [shape = 's32[1]{0}', space=sflag, size = 0x4, scoped, tag = 'scoped memory for tpu_custom_call.1']
    #allocation4 [shape = 'u8[196608]{0}', space=vmem, size = 0x30000, scoped, tag = 'output window, operand 1, single buffered']
    #allocation5 [shape = 's32[1]{0}', space=sflag, size = 0x4, scoped, tag = 'scoped memory for tpu_custom_call.1']
    %12 = vsyncpa [#allocation3], 0
    %13 = vsyncpa [#allocation5], 0
    // Predicated region
    $region2: #{tpu_custom_call.1} parent=1 // pred_check
      _
    $region3: #{tpu_custom_call.1} parent=1 // pred_check_branch
      %15 = sbr.rel (0) target = $region5
    $region4: #{tpu_custom_call.1} parent=1 // pred_region
      _
    $region5: #{tpu_custom_call.1} parent=1 // pred_fallthru
      _
    // Predicated region
    $region6: #{tpu_custom_call.1} parent=1 // pred_check
      _
    $region7: #{tpu_custom_call.1} parent=1 // pred_check_branch
      %17 = sbr.rel (0) target = $region9
    $region8: #{tpu_custom_call.1} parent=1 // pred_region
      _
    $region9: #{tpu_custom_call.1} parent=1 // pred_fallthru
      _
    // Predicated region
    $region10: #{tpu_custom_call.1} parent=1 // pred_check
      _
    $region11: #{tpu_custom_call.1} parent=1 // pred_check_branch
      %19 = sbr.rel (0) target = $region13
    $region12: #{tpu_custom_call.1} parent=1 // pred_region
      _
    $region13: #{tpu_custom_call.1} parent=1 // pred_fallthru
      _
    // Predicated region
    $region14: #{tpu_custom_call.1} parent=1 // pred_check
      _
    $region15: #{tpu_custom_call.1} parent=1 // pred_check_branch
      %21 = sbr.rel (0) target = $region17
    $region16: #{tpu_custom_call.1} parent=1 // pred_region
      _
    $region17: #{tpu_custom_call.1} parent=1 // pred_fallthru
      _
    // Predicated region
    $region18: #{tpu_custom_call.1} parent=1 // pred_check
      _
    $region19: #{tpu_custom_call.1} parent=1 // pred_check_branch
      %23 = sbr.rel (0) target = $region21
    $region20: #{tpu_custom_call.1} parent=1 // pred_region
      _
    $region21: #{tpu_custom_call.1} parent=1 // pred_fallthru
      _
    %v25 = vld [vmem:[%s0] sm:$0xf]
    %v26 = vld [vmem:[%s0 + $0x4] sm:$0xf]
    %v27 = vld [vmem:[%s0 + $0x8] sm:$0xf]
    %v28 = vld [vmem:[%s0 + $0xc] sm:$0xf]
    %v29 = vld [vmem:[%s0 + $0x10] sm:$0xf]
    %v30 = vld [vmem:[%s0 + $0x14] sm:$0xf]
    %v31 = vld [vmem:[%s0 + $0x18] sm:$0xf]
    %v32 = vld [vmem:[%s0 + $0x1c] sm:$0xf]
    %v33 = vld [vmem:[%s0 + $0x20] sm:$0xf]
    %v34 = vld [vmem:[%s0 + $0x24] sm:$0xf]
    %v35 = vld [vmem:[%s0 + $0x28] sm:$0xf]
    %v36 = vld [vmem:[%s0 + $0x2c] sm:$0xf]
    %v37 = vld [vmem:[%s0 + $0x30] sm:$0xf]
    %v38 = vld [vmem:[%s0 + $0x34] sm:$0xf]
    %v39 = vld [vmem:[%s0 + $0x38] sm:$0xf]
    %v40 = vld [vmem:[%s0 + $0x3c] sm:$0xf]
    %v41 = vld [vmem:[%s0 + $0x40] sm:$0xf]
    %v42 = vld [vmem:[%s0 + $0x44] sm:$0xf]
    %v43 = vld [vmem:[%s0 + $0x48] sm:$0xf]
    %v44 = vld [vmem:[%s0 + $0x4c] sm:$0xf]
    %v45 = vld [vmem:[%s0 + $0x50] sm:$0xf]
    %v46 = vld [vmem:[%s0 + $0x54] sm:$0xf]
    %v47 = vld [vmem:[%s0 + $0x58] sm:$0xf]
    %v48 = vld [vmem:[%s0 + $0x5c] sm:$0xf]
    %v49 = vld [vmem:[%s0 + $0x60] sm:$0xf]
    %v50 = vld [vmem:[%s0 + $0x64] sm:$0xf]
    %v51 = vld [vmem:[%s0 + $0x68] sm:$0xf]
    %v52 = vld [vmem:[%s0 + $0x6c] sm:$0xf]
    %v53 = vld [vmem:[%s0 + $0x70] sm:$0xf]
    %v54 = vld [vmem:[%s0 + $0x74] sm:$0xf]
    %v55 = vld [vmem:[%s0 + $0x78] sm:$0xf]
    %v56 = vld [vmem:[%s0 + $0x7c] sm:$0xf]
    %v57 = vld [vmem:[%s1] sm:$0xff]
    %v58 = vld [vmem:[%s1 + $0x8] sm:$0xff]
    %v59 = vld [vmem:[%s1 + $0x10] sm:$0xff]
    %v60 = vld [vmem:[%s1 + $0x18] sm:$0xff]
    %v61 = vld [vmem:[%s1 + $0x20] sm:$0xff]
    %v62 = vld [vmem:[%s1 + $0x28] sm:$0xff]
    %v63 = vld [vmem:[%s1 + $0x30] sm:$0xff]
    %v64 = vld [vmem:[%s1 + $0x38] sm:$0xff]
    %v65 = vld [vmem:[%s2] sm:$0x3]
    %v67 = vlaneseq
    %v68 = vshrl.u32 %v67, 7
    %v69 = vsub.s32 0, %v68
    %v70 = vrot.slane %v65, %v69
    %v71 = vlaneseq
    %v72 = vshrl.u32 %v71, 7
    %v73 = vsub.s32 1, %v72
    %v74 = vrot.slane %v65, %v73
    %v109 = vunpack.c.l.b16 %v25
    %v110 = vunpack.c.l.b16 %v26
    %v111 = vunpack.c.l.b16 %v27
    %v112 = vunpack.c.l.b16 %v28
    %v113 = vunpack.c.l.b16 %v29
    %v114 = vunpack.c.l.b16 %v30
    %v115 = vunpack.c.l.b16 %v31
    %v116 = vunpack.c.l.b16 %v32
    %v117 = vunpack.c.l.b16 %v33
    %v118 = vunpack.c.l.b16 %v34
    %v119 = vunpack.c.l.b16 %v35
    %v120 = vunpack.c.l.b16 %v36
    %v121 = vunpack.c.l.b16 %v37
    %v122 = vunpack.c.l.b16 %v38
    %v123 = vunpack.c.l.b16 %v39
    %v124 = vunpack.c.l.b16 %v40
    %v125 = vunpack.c.l.b16 %v41
    %v126 = vunpack.c.l.b16 %v42
    %v127 = vunpack.c.l.b16 %v43
    %v128 = vunpack.c.l.b16 %v44
    %v129 = vunpack.c.l.b16 %v45
    %v130 = vunpack.c.l.b16 %v46
    %v131 = vunpack.c.l.b16 %v47
    %v132 = vunpack.c.l.b16 %v48
    %v133 = vunpack.c.l.b16 %v49
    %v134 = vunpack.c.l.b16 %v50
    %v135 = vunpack.c.l.b16 %v51
    %v136 = vunpack.c.l.b16 %v52
    %v137 = vunpack.c.l.b16 %v53
    %v138 = vunpack.c.l.b16 %v54
    %v139 = vunpack.c.l.b16 %v55
    %v140 = vunpack.c.l.b16 %v56
    %v141 = vpack.c.b16 %v110, %v109
    %v142 = vpack.c.b16 %v112, %v111
    %v143 = vpack.c.b16 %v114, %v113
    %v144 = vpack.c.b16 %v116, %v115
    %v145 = vpack.c.b16 %v118, %v117
    %v146 = vpack.c.b16 %v120, %v119
    %v147 = vpack.c.b16 %v122, %v121
    %v148 = vpack.c.b16 %v124, %v123
    %v149 = vpack.c.b16 %v126, %v125
    %v150 = vpack.c.b16 %v128, %v127
    %v151 = vpack.c.b16 %v130, %v129
    %v152 = vpack.c.b16 %v132, %v131
    %v153 = vpack.c.b16 %v134, %v133
    %v154 = vpack.c.b16 %v136, %v135
    %v155 = vpack.c.b16 %v138, %v137
    %v156 = vpack.c.b16 %v140, %v139
    %v165 = vunpack.c.l.b16 %v57
    %v166 = vunpack.c.h.b16 %v57
    %v167 = vunpack.c.l.b16 %v58
    %v168 = vunpack.c.h.b16 %v58
    %v169 = vunpack.c.l.b16 %v59
    %v170 = vunpack.c.h.b16 %v59
    %v171 = vunpack.c.l.b16 %v60
    %v172 = vunpack.c.h.b16 %v60
    %v173 = vunpack.c.l.b16 %v61
    %v174 = vunpack.c.h.b16 %v61
    %v175 = vunpack.c.l.b16 %v62
    %v176 = vunpack.c.h.b16 %v62
    %v177 = vunpack.c.l.b16 %v63
    %v178 = vunpack.c.h.b16 %v63
    %v179 = vunpack.c.l.b16 %v64
    %v180 = vunpack.c.h.b16 %v64
    %v181 = vpack.c.b16 %v167, %v165
    %v182 = vpack.c.b16 %v168, %v166
    %v183 = vpack.c.b16 %v171, %v169
    %v184 = vpack.c.b16 %v172, %v170
    %v185 = vpack.c.b16 %v175, %v173
    %v186 = vpack.c.b16 %v176, %v174
    %v187 = vpack.c.b16 %v179, %v177
    %v188 = vpack.c.b16 %v180, %v178
    %vm197 = vcmask 523264
    %v199 = vsel %vm197, %v141, 0
    %v202 = vsel %vm197, %v142, 0
    %v205 = vsel %vm197, %v143, 0
    %v208 = vsel %vm197, %v144, 0
    %v211 = vsel %vm197, %v145, 0
    %v214 = vsel %vm197, %v146, 0
    %v217 = vsel %vm197, %v147, 0
    %v220 = vsel %vm197, %v148, 0
    %v223 = vsel %vm197, %v149, 0
    %v226 = vsel %vm197, %v150, 0
    %v229 = vsel %vm197, %v151, 0
    %v232 = vsel %vm197, %v152, 0
    %v235 = vsel %vm197, %v153, 0
    %v238 = vsel %vm197, %v154, 0
    %v241 = vsel %vm197, %v155, 0
    %v244 = vsel %vm197, %v156, 0
    %246 = vmatprep.subr.bf16.mxu0 %v182
    %247 = vmatpush1.bf16.msra.mxu0 %v181
    %248 = vmatprep.subr.bf16.mxu0 %v184
    %249 = vmatpush1.bf16.msra.mxu0 %v183
    %250 = vmatprep.subr.bf16.mxu0 %v186
    %251 = vmatpush1.bf16.msra.mxu0 %v185
    %252 = vmatprep.subr.bf16.mxu0 %v188
    %253 = vmatpush1.bf16.msra.mxu0 %v187
    %254 = vmatprep.subr.bf16.mxu0 0
    %255 = vmatpush1.bf16.msra.mxu0 0
    %256 = vmatprep.subr.bf16.mxu0 0
    %257 = vmatpush1.bf16.msra.mxu0 0
    %258 = vmatprep.subr.bf16.mxu0 0
    %259 = vmatpush1.bf16.msra.mxu0 0
    %260 = vmatprep.subr.bf16.mxu0 0
    %261 = vmatpush1.bf16.msra.mxu0 0
    %262 = vmatprep.subr.bf16.mxu0 0
    %263 = vmatpush1.bf16.msra.mxu0 0
    %264 = vmatprep.subr.bf16.mxu0 0
    %265 = vmatpush1.bf16.msra.mxu0 0
    %266 = vmatprep.subr.bf16.mxu0 0
    %267 = vmatpush1.bf16.msra.mxu0 0
    %268 = vmatprep.subr.bf16.mxu0 0
    %269 = vmatpush1.bf16.msra.mxu0 0
    %270 = vmatprep.subr.bf16.mxu0 0
    %271 = vmatpush1.bf16.msra.mxu0 0
    %272 = vmatprep.subr.bf16.mxu0 0
    %273 = vmatpush1.bf16.msra.mxu0 0
    %274 = vmatprep.subr.bf16.mxu0 0
    %275 = vmatpush1.bf16.msra.mxu0 0
    %276 = vmatprep.subr.bf16.mxu0 0
    %277 = vmatpush1.bf16.msra.mxu0 0
    %278 = vmatprep.mubr.bf16.mxu0 0
    %279 = vmatmul.mubr.bf16.gmra.mrb[0].mxu0 %v199
    %v280 = vpop.f32.mrb[0].mxu0
    %v281 = vadd.f32 %v70, %v280
    %v282 = vpop.f32.mrb[0].mxu0
    %v283 = vadd.f32 %v74, %v282
    %v284 = vpop.f32.mrb[0].mxu0
    %v285 = vadd.f32 %v70, %v284
    %v286 = vpop.f32.mrb[0].mxu0
    %v287 = vadd.f32 %v74, %v286
    %288 = vmatprep.mubr.bf16.mxu0 0
    %289 = vmatmul.mubr.bf16.gmra.mrb[0].mxu0 %v202
    %v290 = vpop.f32.mrb[0].mxu0
    %v291 = vadd.f32 %v70, %v290
    %v292 = vpop.f32.mrb[0].mxu0
    %v293 = vadd.f32 %v74, %v292
    %v294 = vpop.f32.mrb[0].mxu0
    %v295 = vadd.f32 %v70, %v294
    %v296 = vpop.f32.mrb[0].mxu0
    %v297 = vadd.f32 %v74, %v296
    %298 = vmatprep.mubr.bf16.mxu0 0
    %299 = vmatmul.mubr.bf16.gmra.mrb[0].mxu0 %v205
    %v300 = vpop.f32.mrb[0].mxu0
    %v301 = vadd.f32 %v70, %v300
    %v302 = vpop.f32.mrb[0].mxu0
    %v303 = vadd.f32 %v74, %v302
    %v304 = vpop.f32.mrb[0].mxu0
    %v305 = vadd.f32 %v70, %v304
    %v306 = vpop.f32.mrb[0].mxu0
    %v307 = vadd.f32 %v74, %v306
    %308 = vmatprep.mubr.bf16.mxu0 0
    %309 = vmatmul.mubr.bf16.gmra.mrb[0].mxu0 %v208
    %v310 = vpop.f32.mrb[0].mxu0
    %v311 = vadd.f32 %v70, %v310
    %v312 = vpop.f32.mrb[0].mxu0
    %v313 = vadd.f32 %v74, %v312
    %v314 = vpop.f32.mrb[0].mxu0
    %v315 = vadd.f32 %v70, %v314
    %v316 = vpop.f32.mrb[0].mxu0
    %v317 = vadd.f32 %v74, %v316
    %318 = vmatprep.mubr.bf16.mxu0 0
    %319 = vmatmul.mubr.bf16.gmra.mrb[0].mxu0 %v211
    %v320 = vpop.f32.mrb[0].mxu0
    %v321 = vadd.f32 %v70, %v320
    %v322 = vpop.f32.mrb[0].mxu0
    %v323 = vadd.f32 %v74, %v322
    %v324 = vpop.f32.mrb[0].mxu0
    %v325 = vadd.f32 %v70, %v324
    %v326 = vpop.f32.mrb[0].mxu0
    %v327 = vadd.f32 %v74, %v326
    %328 = vmatprep.mubr.bf16.mxu0 0
    %329 = vmatmul.mubr.bf16.gmra.mrb[0].mxu0 %v214
    %v330 = vpop.f32.mrb[0].mxu0
    %v331 = vadd.f32 %v70, %v330
    %v332 = vpop.f32.mrb[0].mxu0
    %v333 = vadd.f32 %v74, %v332
    %v334 = vpop.f32.mrb[0].mxu0
    %v335 = vadd.f32 %v70, %v334
    %v336 = vpop.f32.mrb[0].mxu0
    %v337 = vadd.f32 %v74, %v336
    %338 = vmatprep.mubr.bf16.mxu0 0
    %339 = vmatmul.mubr.bf16.gmra.mrb[0].mxu0 %v217
    %v340 = vpop.f32.mrb[0].mxu0
    %v341 = vadd.f32 %v70, %v340
    %v342 = vpop.f32.mrb[0].mxu0
    %v343 = vadd.f32 %v74, %v342
    %v344 = vpop.f32.mrb[0].mxu0
    %v345 = vadd.f32 %v70, %v344
    %v346 = vpop.f32.mrb[0].mxu0
    %v347 = vadd.f32 %v74, %v346
    %348 = vmatprep.mubr.bf16.mxu0 0
    %349 = vmatmul.mubr.bf16.gmra.mrb[0].mxu0 %v220
    %v350 = vpop.f32.mrb[0].mxu0
    %v351 = vadd.f32 %v70, %v350
    %v352 = vpop.f32.mrb[0].mxu0
    %v353 = vadd.f32 %v74, %v352
    %v354 = vpop.f32.mrb[0].mxu0
    %v355 = vadd.f32 %v70, %v354
    %v356 = vpop.f32.mrb[0].mxu0
    %v357 = vadd.f32 %v74, %v356
    %358 = vmatprep.mubr.bf16.mxu0 0
    %359 = vmatmul.mubr.bf16.gmra.mrb[0].mxu0 %v223
    %v360 = vpop.f32.mrb[0].mxu0
    %v361 = vadd.f32 %v70, %v360
    %v362 = vpop.f32.mrb[0].mxu0
    %v363 = vadd.f32 %v74, %v362
    %v364 = vpop.f32.mrb[0].mxu0
    %v365 = vadd.f32 %v70, %v364
    %v366 = vpop.f32.mrb[0].mxu0
    %v367 = vadd.f32 %v74, %v366
    %368 = vmatprep.mubr.bf16.mxu0 0
    %369 = vmatmul.mubr.bf16.gmra.mrb[0].mxu0 %v226
    %v370 = vpop.f32.mrb[0].mxu0
    %v371 = vadd.f32 %v70, %v370
    %v372 = vpop.f32.mrb[0].mxu0
    %v373 = vadd.f32 %v74, %v372
    %v374 = vpop.f32.mrb[0].mxu0
    %v375 = vadd.f32 %v70, %v374
    %v376 = vpop.f32.mrb[0].mxu0
    %v377 = vadd.f32 %v74, %v376
    %378 = vmatprep.mubr.bf16.mxu0 0
    %379 = vmatmul.mubr.bf16.gmra.mrb[0].mxu0 %v229
    %v380 = vpop.f32.mrb[0].mxu0
    %v381 = vadd.f32 %v70, %v380
    %v382 = vpop.f32.mrb[0].mxu0
    %v383 = vadd.f32 %v74, %v382
    %v384 = vpop.f32.mrb[0].mxu0
    %v385 = vadd.f32 %v70, %v384
    %v386 = vpop.f32.mrb[0].mxu0
    %v387 = vadd.f32 %v74, %v386
    %388 = vmatprep.mubr.bf16.mxu0 0
    %389 = vmatmul.mubr.bf16.gmra.mrb[0].mxu0 %v232
    %v390 = vpop.f32.mrb[0].mxu0
    %v391 = vadd.f32 %v70, %v390
    %v392 = vpop.f32.mrb[0].mxu0
    %v393 = vadd.f32 %v74, %v392
    %v394 = vpop.f32.mrb[0].mxu0
    %v395 = vadd.f32 %v70, %v394
    %v396 = vpop.f32.mrb[0].mxu0
    %v397 = vadd.f32 %v74, %v396
    %398 = vmatprep.mubr.bf16.mxu0 0
    %399 = vmatmul.mubr.bf16.gmra.mrb[0].mxu0 %v235
    %v400 = vpop.f32.mrb[0].mxu0
    %v401 = vadd.f32 %v70, %v400
    %v402 = vpop.f32.mrb[0].mxu0
    %v403 = vadd.f32 %v74, %v402
    %v404 = vpop.f32.mrb[0].mxu0
    %v405 = vadd.f32 %v70, %v404
    %v406 = vpop.f32.mrb[0].mxu0
    %v407 = vadd.f32 %v74, %v406
    %408 = vmatprep.mubr.bf16.mxu0 0
    %409 = vmatmul.mubr.bf16.gmra.mrb[0].mxu0 %v238
    %v410 = vpop.f32.mrb[0].mxu0
    %v411 = vadd.f32 %v70, %v410
    %v412 = vpop.f32.mrb[0].mxu0
    %v413 = vadd.f32 %v74, %v412
    %v414 = vpop.f32.mrb[0].mxu0
    %v415 = vadd.f32 %v70, %v414
    %v416 = vpop.f32.mrb[0].mxu0
    %v417 = vadd.f32 %v74, %v416
    %418 = vmatprep.mubr.bf16.mxu0 0
    %419 = vmatmul.mubr.bf16.gmra.mrb[0].mxu0 %v241
    %v420 = vpop.f32.mrb[0].mxu0
    %v421 = vadd.f32 %v70, %v420
    %v422 = vpop.f32.mrb[0].mxu0
    %v423 = vadd.f32 %v74, %v422
    %v424 = vpop.f32.mrb[0].mxu0
    %v425 = vadd.f32 %v70, %v424
    %v426 = vpop.f32.mrb[0].mxu0
    %v427 = vadd.f32 %v74, %v426
    %428 = vmatprep.mubr.bf16.mxu0 0
    %429 = vmatmul.mubr.bf16.gmra.mrb[0].mxu0 %v244
    %v430 = vpop.f32.mrb[0].mxu0
    %v431 = vadd.f32 %v70, %v430
    %v432 = vpop.f32.mrb[0].mxu0
    %v433 = vadd.f32 %v74, %v432
    %v434 = vpop.f32.mrb[0].mxu0
    %v435 = vadd.f32 %v70, %v434
    %v436 = vpop.f32.mrb[0].mxu0
    %v437 = vadd.f32 %v74, %v436
    %438 = vdwg.mxu0
    %v439 = vpack.c.bf16 %v285, %v281
    %v440 = vpack.c.bf16 %v287, %v283
    %v441 = vpack.c.bf16 %v295, %v291
    %v442 = vpack.c.bf16 %v297, %v293
    %v443 = vpack.c.bf16 %v305, %v301
    %v444 = vpack.c.bf16 %v307, %v303
    %v445 = vpack.c.bf16 %v315, %v311
    %v446 = vpack.c.bf16 %v317, %v313
    %v447 = vpack.c.bf16 %v325, %v321
    %v448 = vpack.c.bf16 %v327, %v323
    %v449 = vpack.c.bf16 %v335, %v331
    %v450 = vpack.c.bf16 %v337, %v333
    %v451 = vpack.c.bf16 %v345, %v341
    %v452 = vpack.c.bf16 %v347, %v343
    %v453 = vpack.c.bf16 %v355, %v351
    %v454 = vpack.c.bf16 %v357, %v353
    %v455 = vpack.c.bf16 %v365, %v361
    %v456 = vpack.c.bf16 %v367, %v363
    %v457 = vpack.c.bf16 %v375, %v371
    %v458 = vpack.c.bf16 %v377, %v373
    %v459 = vpack.c.bf16 %v385, %v381
    %v460 = vpack.c.bf16 %v387, %v383
    %v461 = vpack.c.bf16 %v395, %v391
    %v462 = vpack.c.bf16 %v397, %v393
    %v463 = vpack.c.bf16 %v405, %v401
    %v464 = vpack.c.bf16 %v407, %v403
    %v465 = vpack.c.bf16 %v415, %v411
    %v466 = vpack.c.bf16 %v417, %v413
    %v467 = vpack.c.bf16 %v425, %v421
    %v468 = vpack.c.bf16 %v427, %v423
    %v469 = vpack.c.bf16 %v435, %v431
    %v470 = vpack.c.bf16 %v437, %v433
    %v503 = vunpack.c.l.b16 %v439
    %v504 = vunpack.c.l.b16 %v440
    %v505 = vunpack.c.h.b16 %v439
    %v506 = vunpack.c.h.b16 %v440
    %v507 = vunpack.c.l.b16 %v441
    %v508 = vunpack.c.l.b16 %v442
    %v509 = vunpack.c.h.b16 %v441
    %v510 = vunpack.c.h.b16 %v442
    %v511 = vunpack.c.l.b16 %v443
    %v512 = vunpack.c.l.b16 %v444
    %v513 = vunpack.c.h.b16 %v443
    %v514 = vunpack.c.h.b16 %v444
    %v515 = vunpack.c.l.b16 %v445
    %v516 = vunpack.c.l.b16 %v446
    %v517 = vunpack.c.h.b16 %v445
    %v518 = vunpack.c.h.b16 %v446
    %v519 = vunpack.c.l.b16 %v447
    %v520 = vunpack.c.l.b16 %v448
    %v521 = vunpack.c.h.b16 %v447
    %v522 = vunpack.c.h.b16 %v448
    %v523 = vunpack.c.l.b16 %v449
    %v524 = vunpack.c.l.b16 %v450
    %v525 = vunpack.c.h.b16 %v449
    %v526 = vunpack.c.h.b16 %v450
    %v527 = vunpack.c.l.b16 %v451
    %v528 = vunpack.c.l.b16 %v452
    %v529 = vunpack.c.h.b16 %v451
    %v530 = vunpack.c.h.b16 %v452
    %v531 = vunpack.c.l.b16 %v453
    %v532 = vunpack.c.l.b16 %v454
    %v533 = vunpack.c.h.b16 %v453
    %v534 = vunpack.c.h.b16 %v454
    %v535 = vunpack.c.l.b16 %v455
    %v536 = vunpack.c.l.b16 %v456
    %v537 = vunpack.c.h.b16 %v455
    %v538 = vunpack.c.h.b16 %v456
    %v539 = vunpack.c.l.b16 %v457
    %v540 = vunpack.c.l.b16 %v458
    %v541 = vunpack.c.h.b16 %v457
    %v542 = vunpack.c.h.b16 %v458
    %v543 = vunpack.c.l.b16 %v459
    %v544 = vunpack.c.l.b16 %v460
    %v545 = vunpack.c.h.b16 %v459
    %v546 = vunpack.c.h.b16 %v460
    %v547 = vunpack.c.l.b16 %v461
    %v548 = vunpack.c.l.b16 %v462
    %v549 = vunpack.c.h.b16 %v461
    %v550 = vunpack.c.h.b16 %v462
    %v551 = vunpack.c.l.b16 %v463
    %v552 = vunpack.c.l.b16 %v464
    %v553 = vunpack.c.h.b16 %v463
    %v554 = vunpack.c.h.b16 %v464
    %v555 = vunpack.c.l.b16 %v465
    %v556 = vunpack.c.l.b16 %v466
    %v557 = vunpack.c.h.b16 %v465
    %v558 = vunpack.c.h.b16 %v466
    %v559 = vunpack.c.l.b16 %v467
    %v560 = vunpack.c.l.b16 %v468
    %v561 = vunpack.c.h.b16 %v467
    %v562 = vunpack.c.h.b16 %v468
    %v563 = vunpack.c.l.b16 %v469
    %v564 = vunpack.c.l.b16 %v470
    %v565 = vunpack.c.h.b16 %v469
    %v566 = vunpack.c.h.b16 %v470
    %v567 = vpack.c.b16 %v504, %v503
    %v568 = vpack.c.b16 %v506, %v505
    %v569 = vpack.c.b16 %v508, %v507
    %v570 = vpack.c.b16 %v510, %v509
    %v571 = vpack.c.b16 %v512, %v511
    %v572 = vpack.c.b16 %v514, %v513
    %v573 = vpack.c.b16 %v516, %v515
    %v574 = vpack.c.b16 %v518, %v517
    %v575 = vpack.c.b16 %v520, %v519
    %v576 = vpack.c.b16 %v522, %v521
    %v577 = vpack.c.b16 %v524, %v523
    %v578 = vpack.c.b16 %v526, %v525
    %v579 = vpack.c.b16 %v528, %v527
    %v580 = vpack.c.b16 %v530, %v529
    %v581 = vpack.c.b16 %v532, %v531
    %v582 = vpack.c.b16 %v534, %v533
    %v583 = vpack.c.b16 %v536, %v535
    %v584 = vpack.c.b16 %v538, %v537
    %v585 = vpack.c.b16 %v540, %v539
    %v586 = vpack.c.b16 %v542, %v541
    %v587 = vpack.c.b16 %v544, %v543
    %v588 = vpack.c.b16 %v546, %v545
    %v589 = vpack.c.b16 %v548, %v547
    %v590 = vpack.c.b16 %v550, %v549
    %v591 = vpack.c.b16 %v552, %v551
    %v592 = vpack.c.b16 %v554, %v553
    %v593 = vpack.c.b16 %v556, %v555
    %v594 = vpack.c.b16 %v558, %v557
    %v595 = vpack.c.b16 %v560, %v559
    %v596 = vpack.c.b16 %v562, %v561
    %v597 = vpack.c.b16 %v564, %v563
    %v598 = vpack.c.b16 %v566, %v565
    %631 = vst [vmem:[#allocation2] sm:$0xff] %v567
    %632 = vst [vmem:[#allocation2 + $0x8] sm:$0xff] %v568
    %633 = vst [vmem:[#allocation2 + $0x10] sm:$0xff] %v569
    %634 = vst [vmem:[#allocation2 + $0x18] sm:$0xff] %v570
    %635 = vst [vmem:[#allocation2 + $0x20] sm:$0xff] %v571
    %636 = vst [vmem:[#allocation2 + $0x28] sm:$0xff] %v572
    %637 = vst [vmem:[#allocation2 + $0x30] sm:$0xff] %v573
    %638 = vst [vmem:[#allocation2 + $0x38] sm:$0xff] %v574
    %639 = vst [vmem:[#allocation2 + $0x40] sm:$0xff] %v575
    %640 = vst [vmem:[#allocation2 + $0x48] sm:$0xff] %v576
    %641 = vst [vmem:[#allocation2 + $0x50] sm:$0xff] %v577
    %642 = vst [vmem:[#allocation2 + $0x58] sm:$0xff] %v578
    %643 = vst [vmem:[#allocation2 + $0x60] sm:$0xff] %v579
    %644 = vst [vmem:[#allocation2 + $0x68] sm:$0xff] %v580
    %645 = vst [vmem:[#allocation2 + $0x70] sm:$0xff] %v581
    %646 = vst [vmem:[#allocation2 + $0x78] sm:$0xff] %v582
    %647 = vst [vmem:[#allocation2 + $0x80] sm:$0xff] %v583
    %648 = vst [vmem:[#allocation2 + $0x88] sm:$0xff] %v584
    %649 = vst [vmem:[#allocation2 + $0x90] sm:$0xff] %v585
    %650 = vst [vmem:[#allocation2 + $0x98] sm:$0xff] %v586
    %651 = vst [vmem:[#allocation2 + $0xa0] sm:$0xff] %v587
    %652 = vst [vmem:[#allocation2 + $0xa8] sm:$0xff] %v588
    %653 = vst [vmem:[#allocation2 + $0xb0] sm:$0xff] %v589
    %654 = vst [vmem:[#allocation2 + $0xb8] sm:$0xff] %v590
    %655 = vst [vmem:[#allocation2 + $0xc0] sm:$0xff] %v591
    %656 = vst [vmem:[#allocation2 + $0xc8] sm:$0xff] %v592
    %657 = vst [vmem:[#allocation2 + $0xd0] sm:$0xff] %v593
    %658 = vst [vmem:[#allocation2 + $0xd8] sm:$0xff] %v594
    %659 = vst [vmem:[#allocation2 + $0xe0] sm:$0xff] %v595
    %660 = vst [vmem:[#allocation2 + $0xe8] sm:$0xff] %v596
    %661 = vst [vmem:[#allocation2 + $0xf0] sm:$0xff] %v597
    %662 = vst [vmem:[#allocation2 + $0xf8] sm:$0xff] %v598
    %v663 = vld [vmem:[%s3] sm:$0xff]
    %v664 = vld [vmem:[%s3 + $0x8] sm:$0xf]
    %v665 = vld [vmem:[%s3 + $0xc] sm:$0xff]
    %v666 = vld [vmem:[%s3 + $0x14] sm:$0xf]
    %v667 = vld [vmem:[%s3 + $0x18] sm:$0xff]
    %v668 = vld [vmem:[%s3 + $0x20] sm:$0xf]
    %v669 = vld [vmem:[%s3 + $0x24] sm:$0xff]
    %v670 = vld [vmem:[%s3 + $0x2c] sm:$0xf]
    %v671 = vld [vmem:[%s3 + $0x30] sm:$0xff]
    %v672 = vld [vmem:[%s3 + $0x38] sm:$0xf]
    %v673 = vld [vmem:[%s3 + $0x3c] sm:$0xff]
    %v674 = vld [vmem:[%s3 + $0x44] sm:$0xf]
    %v675 = vld [vmem:[%s3 + $0x48] sm:$0xff]
    %v676 = vld [vmem:[%s3 + $0x50] sm:$0xf]
    %v677 = vld [vmem:[%s3 + $0x54] sm:$0xff]
    %v678 = vld [vmem:[%s3 + $0x5c] sm:$0xf]
    %v679 = vld [vmem:[%s4] sm:$0x7]
    %v681 = vlaneseq
    %v682 = vshrl.u32 %v681, 7
    %v683 = vsub.s32 0, %v682
    %v684 = vrot.slane %v679, %v683
    %v685 = vlaneseq
    %v686 = vshrl.u32 %v685, 7
    %v687 = vsub.s32 1, %v686
    %v688 = vrot.slane %v679, %v687
    %v689 = vlaneseq
    %v690 = vshrl.u32 %v689, 7
    %v691 = vsub.s32 2, %v690
    %v692 = vrot.slane %v679, %v691
    %v712 = vunpack.c.l.b16 %v663
    %v713 = vunpack.c.h.b16 %v663
    %v714 = vunpack.c.l.b16 %v664
    %v715 = vunpack.c.l.b16 %v665
    %v716 = vunpack.c.h.b16 %v665
    %v717 = vunpack.c.l.b16 %v666
    %v718 = vunpack.c.l.b16 %v667
    %v719 = vunpack.c.h.b16 %v667
    %v720 = vunpack.c.l.b16 %v668
    %v721 = vunpack.c.l.b16 %v669
    %v722 = vunpack.c.h.b16 %v669
    %v723 = vunpack.c.l.b16 %v670
    %v724 = vunpack.c.l.b16 %v671
    %v725 = vunpack.c.h.b16 %v671
    %v726 = vunpack.c.l.b16 %v672
    %v727 = vunpack.c.l.b16 %v673
    %v728 = vunpack.c.h.b16 %v673
    %v729 = vunpack.c.l.b16 %v674
    %v730 = vunpack.c.l.b16 %v675
    %v731 = vunpack.c.h.b16 %v675
    %v732 = vunpack.c.l.b16 %v676
    %v733 = vunpack.c.l.b16 %v677
    %v734 = vunpack.c.h.b16 %v677
    %v735 = vunpack.c.l.b16 %v678
    %v736 = vpack.c.b16 %v715, %v712
    %v737 = vpack.c.b16 %v716, %v713
    %v738 = vpack.c.b16 %v717, %v714
    %v739 = vpack.c.b16 %v721, %v718
    %v740 = vpack.c.b16 %v722, %v719
    %v741 = vpack.c.b16 %v723, %v720
    %v742 = vpack.c.b16 %v727, %v724
    %v743 = vpack.c.b16 %v728, %v725
    %v744 = vpack.c.b16 %v729, %v726
    %v745 = vpack.c.b16 %v733, %v730
    %v746 = vpack.c.b16 %v734, %v731
    %v747 = vpack.c.b16 %v735, %v732
    %760 = vmatprep.subr.bf16.mxu0 %v737
    %761 = vmatpush1.bf16.msra.mxu0 %v736
    %762 = vmatprep.subr.bf16.mxu0 %v740
    %763 = vmatpush1.bf16.msra.mxu0 %v739
    %764 = vmatprep.subr.bf16.mxu0 %v743
    %765 = vmatpush1.bf16.msra.mxu0 %v742
    %766 = vmatprep.subr.bf16.mxu0 %v746
    %767 = vmatpush1.bf16.msra.mxu0 %v745
    %768 = vmatprep.subr.bf16.mxu0 0
    %769 = vmatpush1.bf16.msra.mxu0 0
    %770 = vmatprep.subr.bf16.mxu0 0
    %771 = vmatpush1.bf16.msra.mxu0 0
    %772 = vmatprep.subr.bf16.mxu0 0
    %773 = vmatpush1.bf16.msra.mxu0 0
    %774 = vmatprep.subr.bf16.mxu0 0
    %775 = vmatpush1.bf16.msra.mxu0 0
    %776 = vmatprep.subr.bf16.mxu0 0
    %777 = vmatpush1.bf16.msra.mxu0 0
    %778 = vmatprep.subr.bf16.mxu0 0
    %779 = vmatpush1.bf16.msra.mxu0 0
    %780 = vmatprep.subr.bf16.mxu0 0
    %781 = vmatpush1.bf16.msra.mxu0 0
    %782 = vmatprep.subr.bf16.mxu0 0
    %783 = vmatpush1.bf16.msra.mxu0 0
    %784 = vmatprep.subr.bf16.mxu0 0
    %785 = vmatpush1.bf16.msra.mxu0 0
    %786 = vmatprep.subr.bf16.mxu0 0
    %787 = vmatpush1.bf16.msra.mxu0 0
    %788 = vmatprep.subr.bf16.mxu0 0
    %789 = vmatpush1.bf16.msra.mxu0 0
    %790 = vmatprep.subr.bf16.mxu0 0
    %791 = vmatpush1.bf16.msra.mxu0 0
    %792 = vmatprep.mubr.bf16.mxu0 0
    %793 = vmatmul.mubr.bf16.gmra.mrb[0].mxu0 %v199
    %v794 = vpop.f32.mrb[0].mxu0
    %v795 = vadd.f32 %v684, %v794
    %v796 = vpop.f32.mrb[0].mxu0
    %v797 = vadd.f32 %v688, %v796
    %v798 = vpop.f32.mrb[0].mxu0
    %v799 = vadd.f32 %v684, %v798
    %v800 = vpop.f32.mrb[0].mxu0
    %v801 = vadd.f32 %v688, %v800
    %802 = vmatprep.mubr.bf16.mxu0 0
    %803 = vmatmul.mubr.bf16.gmra.mrb[0].mxu0 %v202
    %v804 = vpop.f32.mrb[0].mxu0
    %v805 = vadd.f32 %v684, %v804
    %v806 = vpop.f32.mrb[0].mxu0
    %v807 = vadd.f32 %v688, %v806
    %v808 = vpop.f32.mrb[0].mxu0
    %v809 = vadd.f32 %v684, %v808
    %v810 = vpop.f32.mrb[0].mxu0
    %v811 = vadd.f32 %v688, %v810
    %812 = vmatprep.mubr.bf16.mxu0 0
    %813 = vmatmul.mubr.bf16.gmra.mrb[0].mxu0 %v205
    %v814 = vpop.f32.mrb[0].mxu0
    %v815 = vadd.f32 %v684, %v814
    %v816 = vpop.f32.mrb[0].mxu0
    %v817 = vadd.f32 %v688, %v816
    %v818 = vpop.f32.mrb[0].mxu0
    %v819 = vadd.f32 %v684, %v818
    %v820 = vpop.f32.mrb[0].mxu0
    %v821 = vadd.f32 %v688, %v820
    %822 = vmatprep.mubr.bf16.mxu0 0
    %823 = vmatmul.mubr.bf16.gmra.mrb[0].mxu0 %v208
    %v824 = vpop.f32.mrb[0].mxu0
    %v825 = vadd.f32 %v684, %v824
    %v826 = vpop.f32.mrb[0].mxu0
    %v827 = vadd.f32 %v688, %v826
    %v828 = vpop.f32.mrb[0].mxu0
    %v829 = vadd.f32 %v684, %v828
    %v830 = vpop.f32.mrb[0].mxu0
    %v831 = vadd.f32 %v688, %v830
    %832 = vmatprep.mubr.bf16.mxu0 0
    %833 = vmatmul.mubr.bf16.gmra.mrb[0].mxu0 %v211
    %v834 = vpop.f32.mrb[0].mxu0
    %v835 = vadd.f32 %v684, %v834
    %v836 = vpop.f32.mrb[0].mxu0
    %v837 = vadd.f32 %v688, %v836
    %v838 = vpop.f32.mrb[0].mxu0
    %v839 = vadd.f32 %v684, %v838
    %v840 = vpop.f32.mrb[0].mxu0
    %v841 = vadd.f32 %v688, %v840
    %842 = vmatprep.mubr.bf16.mxu0 0
    %843 = vmatmul.mubr.bf16.gmra.mrb[0].mxu0 %v214
    %v844 = vpop.f32.mrb[0].mxu0
    %v845 = vadd.f32 %v684, %v844
    %v846 = vpop.f32.mrb[0].mxu0
    %v847 = vadd.f32 %v688, %v846
    %v848 = vpop.f32.mrb[0].mxu0
    %v849 = vadd.f32 %v684, %v848
    %v850 = vpop.f32.mrb[0].mxu0
    %v851 = vadd.f32 %v688, %v850
    %852 = vmatprep.mubr.bf16.mxu0 0
    %853 = vmatmul.mubr.bf16.gmra.mrb[0].mxu0 %v217
    %v854 = vpop.f32.mrb[0].mxu0
    %v855 = vadd.f32 %v684, %v854
    %v856 = vpop.f32.mrb[0].mxu0
    %v857 = vadd.f32 %v688, %v856
    %v858 = vpop.f32.mrb[0].mxu0
    %v859 = vadd.f32 %v684, %v858
    %v860 = vpop.f32.mrb[0].mxu0
    %v861 = vadd.f32 %v688, %v860
    %862 = vmatprep.mubr.bf16.mxu0 0
    %863 = vmatmul.mubr.bf16.gmra.mrb[0].mxu0 %v220
    %v864 = vpop.f32.mrb[0].mxu0
    %v865 = vadd.f32 %v684, %v864
    %v866 = vpop.f32.mrb[0].mxu0
    %v867 = vadd.f32 %v688, %v866
    %v868 = vpop.f32.mrb[0].mxu0
    %v869 = vadd.f32 %v684, %v868
    %v870 = vpop.f32.mrb[0].mxu0
    %v871 = vadd.f32 %v688, %v870
    %872 = vmatprep.mubr.bf16.mxu0 0
    %873 = vmatmul.mubr.bf16.gmra.mrb[0].mxu0 %v223
    %v874 = vpop.f32.mrb[0].mxu0
    %v875 = vadd.f32 %v684, %v874
    %v876 = vpop.f32.mrb[0].mxu0
    %v877 = vadd.f32 %v688, %v876
    %v878 = vpop.f32.mrb[0].mxu0
    %v879 = vadd.f32 %v684, %v878
    %v880 = vpop.f32.mrb[0].mxu0
    %v881 = vadd.f32 %v688, %v880
    %882 = vmatprep.mubr.bf16.mxu0 0
    %883 = vmatmul.mubr.bf16.gmra.mrb[0].mxu0 %v226
    %v884 = vpop.f32.mrb[0].mxu0
    %v885 = vadd.f32 %v684, %v884
    %v886 = vpop.f32.mrb[0].mxu0
    %v887 = vadd.f32 %v688, %v886
    %v888 = vpop.f32.mrb[0].mxu0
    %v889 = vadd.f32 %v684, %v888
    %v890 = vpop.f32.mrb[0].mxu0
    %v891 = vadd.f32 %v688, %v890
    %892 = vmatprep.mubr.bf16.mxu0 0
    %893 = vmatmul.mubr.bf16.gmra.mrb[0].mxu0 %v229
    %v894 = vpop.f32.mrb[0].mxu0
    %v895 = vadd.f32 %v684, %v894
    %v896 = vpop.f32.mrb[0].mxu0
    %v897 = vadd.f32 %v688, %v896
    %v898 = vpop.f32.mrb[0].mxu0
    %v899 = vadd.f32 %v684, %v898
    %v900 = vpop.f32.mrb[0].mxu0
    %v901 = vadd.f32 %v688, %v900
    %902 = vmatprep.mubr.bf16.mxu0 0
    %903 = vmatmul.mubr.bf16.gmra.mrb[0].mxu0 %v232
    %v904 = vpop.f32.mrb[0].mxu0
    %v905 = vadd.f32 %v684, %v904
    %v906 = vpop.f32.mrb[0].mxu0
    %v907 = vadd.f32 %v688, %v906
    %v908 = vpop.f32.mrb[0].mxu0
    %v909 = vadd.f32 %v684, %v908
    %v910 = vpop.f32.mrb[0].mxu0
    %v911 = vadd.f32 %v688, %v910
    %912 = vmatprep.mubr.bf16.mxu0 0
    %913 = vmatmul.mubr.bf16.gmra.mrb[0].mxu0 %v235
    %v914 = vpop.f32.mrb[0].mxu0
    %v915 = vadd.f32 %v684, %v914
    %v916 = vpop.f32.mrb[0].mxu0
    %v917 = vadd.f32 %v688, %v916
    %v918 = vpop.f32.mrb[0].mxu0
    %v919 = vadd.f32 %v684, %v918
    %v920 = vpop.f32.mrb[0].mxu0
    %v921 = vadd.f32 %v688, %v920
    %922 = vmatprep.mubr.bf16.mxu0 0
    %923 = vmatmul.mubr.bf16.gmra.mrb[0].mxu0 %v238
    %v924 = vpop.f32.mrb[0].mxu0
    %v925 = vadd.f32 %v684, %v924
    %v926 = vpop.f32.mrb[0].mxu0
    %v927 = vadd.f32 %v688, %v926
    %v928 = vpop.f32.mrb[0].mxu0
    %v929 = vadd.f32 %v684, %v928
    %v930 = vpop.f32.mrb[0].mxu0
    %v931 = vadd.f32 %v688, %v930
    %932 = vmatprep.mubr.bf16.mxu0 0
    %933 = vmatmul.mubr.bf16.gmra.mrb[0].mxu0 %v241
    %v934 = vpop.f32.mrb[0].mxu0
    %v935 = vadd.f32 %v684, %v934
    %v936 = vpop.f32.mrb[0].mxu0
    %v937 = vadd.f32 %v688, %v936
    %v938 = vpop.f32.mrb[0].mxu0
    %v939 = vadd.f32 %v684, %v938
    %v940 = vpop.f32.mrb[0].mxu0
    %v941 = vadd.f32 %v688, %v940
    %942 = vmatprep.mubr.bf16.mxu0 0
    %943 = vmatmul.mubr.bf16.gmra.mrb[0].mxu0 %v244
    %v944 = vpop.f32.mrb[0].mxu0
    %v945 = vadd.f32 %v684, %v944
    %v946 = vpop.f32.mrb[0].mxu0
    %v947 = vadd.f32 %v688, %v946
    %v948 = vpop.f32.mrb[0].mxu0
    %v949 = vadd.f32 %v684, %v948
    %v950 = vpop.f32.mrb[0].mxu0
    %v951 = vadd.f32 %v688, %v950
    %952 = vdwg.mxu0
    %953 = vmatprep.subr.bf16.mxu0 0
    %954 = vmatpush1.bf16.msra.mxu0 %v738
    %955 = vmatprep.subr.bf16.mxu0 0
    %956 = vmatpush1.bf16.msra.mxu0 %v741
    %957 = vmatprep.subr.bf16.mxu0 0
    %958 = vmatpush1.bf16.msra.mxu0 %v744
    %959 = vmatprep.subr.bf16.mxu0 0
    %960 = vmatpush1.bf16.msra.mxu0 %v747
    %961 = vmatprep.subr.bf16.mxu0 0
    %962 = vmatpush1.bf16.msra.mxu0 0
    %963 = vmatprep.subr.bf16.mxu0 0
    %964 = vmatpush1.bf16.msra.mxu0 0
    %965 = vmatprep.subr.bf16.mxu0 0
    %966 = vmatpush1.bf16.msra.mxu0 0
    %967 = vmatprep.subr.bf16.mxu0 0
    %968 = vmatpush1.bf16.msra.mxu0 0
    %969 = vmatprep.subr.bf16.mxu0 0
    %970 = vmatpush1.bf16.msra.mxu0 0
    %971 = vmatprep.subr.bf16.mxu0 0
    %972 = vmatpush1.bf16.msra.mxu0 0
    %973 = vmatprep.subr.bf16.mxu0 0
    %974 = vmatpush1.bf16.msra.mxu0 0
    %975 = vmatprep.subr.bf16.mxu0 0
    %976 = vmatpush1.bf16.msra.mxu0 0
    %977 = vmatprep.subr.bf16.mxu0 0
    %978 = vmatpush1.bf16.msra.mxu0 0
    %979 = vmatprep.subr.bf16.mxu0 0
    %980 = vmatpush1.bf16.msra.mxu0 0
    %981 = vmatprep.subr.bf16.mxu0 0
    %982 = vmatpush1.bf16.msra.mxu0 0
    %983 = vmatprep.subr.bf16.mxu0 0
    %984 = vmatpush1.bf16.msra.mxu0 0
    %985 = vmatprep.mubr.bf16.mxu0 0
    %986 = vmatmul.mubr.bf16.gmra.mrb[0].mxu0 %v199
    %v987 = vpop.f32.mrb[0].mxu0
    %v988 = vadd.f32 %v692, %v987
    %v989 = vpop.f32.mrb[0].mxu0
    %v990 = vpop.f32.mrb[0].mxu0
    %v991 = vadd.f32 %v692, %v990
    %v992 = vpop.f32.mrb[0].mxu0
    %993 = vmatprep.mubr.bf16.mxu0 0
    %994 = vmatmul.mubr.bf16.gmra.mrb[0].mxu0 %v202
    %v995 = vpop.f32.mrb[0].mxu0
    %v996 = vadd.f32 %v692, %v995
    %v997 = vpop.f32.mrb[0].mxu0
    %v998 = vpop.f32.mrb[0].mxu0
    %v999 = vadd.f32 %v692, %v998
    %v1000 = vpop.f32.mrb[0].mxu0
    %1001 = vmatprep.mubr.bf16.mxu0 0
    %1002 = vmatmul.mubr.bf16.gmra.mrb[0].mxu0 %v205
    %v1003 = vpop.f32.mrb[0].mxu0
    %v1004 = vadd.f32 %v692, %v1003
    %v1005 = vpop.f32.mrb[0].mxu0
    %v1006 = vpop.f32.mrb[0].mxu0
    %v1007 = vadd.f32 %v692, %v1006
    %v1008 = vpop.f32.mrb[0].mxu0
    %1009 = vmatprep.mubr.bf16.mxu0 0
    %1010 = vmatmul.mubr.bf16.gmra.mrb[0].mxu0 %v208
    %v1011 = vpop.f32.mrb[0].mxu0
    %v1012 = vadd.f32 %v692, %v1011
    %v1013 = vpop.f32.mrb[0].mxu0
    %v1014 = vpop.f32.mrb[0].mxu0
    %v1015 = vadd.f32 %v692, %v1014
    %v1016 = vpop.f32.mrb[0].mxu0
    %1017 = vmatprep.mubr.bf16.mxu0 0
    %1018 = vmatmul.mubr.bf16.gmra.mrb[0].mxu0 %v211
    %v1019 = vpop.f32.mrb[0].mxu0
    %v1020 = vadd.f32 %v692, %v1019
    %v1021 = vpop.f32.mrb[0].mxu0
    %v1022 = vpop.f32.mrb[0].mxu0
    %v1023 = vadd.f32 %v692, %v1022
    %v1024 = vpop.f32.mrb[0].mxu0
    %1025 = vmatprep.mubr.bf16.mxu0 0
    %1026 = vmatmul.mubr.bf16.gmra.mrb[0].mxu0 %v214
    %v1027 = vpop.f32.mrb[0].mxu0
    %v1028 = vadd.f32 %v692, %v1027
    %v1029 = vpop.f32.mrb[0].mxu0
    %v1030 = vpop.f32.mrb[0].mxu0
    %v1031 = vadd.f32 %v692, %v1030
    %v1032 = vpop.f32.mrb[0].mxu0
    %1033 = vmatprep.mubr.bf16.mxu0 0
    %1034 = vmatmul.mubr.bf16.gmra.mrb[0].mxu0 %v217
    %v1035 = vpop.f32.mrb[0].mxu0
    %v1036 = vadd.f32 %v692, %v1035
    %v1037 = vpop.f32.mrb[0].mxu0
    %v1038 = vpop.f32.mrb[0].mxu0
    %v1039 = vadd.f32 %v692, %v1038
    %v1040 = vpop.f32.mrb[0].mxu0
    %1041 = vmatprep.mubr.bf16.mxu0 0
    %1042 = vmatmul.mubr.bf16.gmra.mrb[0].mxu0 %v220
    %v1043 = vpop.f32.mrb[0].mxu0
    %v1044 = vadd.f32 %v692, %v1043
    %v1045 = vpop.f32.mrb[0].mxu0
    %v1046 = vpop.f32.mrb[0].mxu0
    %v1047 = vadd.f32 %v692, %v1046
    %v1048 = vpop.f32.mrb[0].mxu0
    %1049 = vmatprep.mubr.bf16.mxu0 0
    %1050 = vmatmul.mubr.bf16.gmra.mrb[0].mxu0 %v223
    %v1051 = vpop.f32.mrb[0].mxu0
    %v1052 = vadd.f32 %v692, %v1051
    %v1053 = vpop.f32.mrb[0].mxu0
    %v1054 = vpop.f32.mrb[0].mxu0
    %v1055 = vadd.f32 %v692, %v1054
    %v1056 = vpop.f32.mrb[0].mxu0
    %1057 = vmatprep.mubr.bf16.mxu0 0
    %1058 = vmatmul.mubr.bf16.gmra.mrb[0].mxu0 %v226
    %v1059 = vpop.f32.mrb[0].mxu0
    %v1060 = vadd.f32 %v692, %v1059
    %v1061 = vpop.f32.mrb[0].mxu0
    %v1062 = vpop.f32.mrb[0].mxu0
    %v1063 = vadd.f32 %v692, %v1062
    %v1064 = vpop.f32.mrb[0].mxu0
    %1065 = vmatprep.mubr.bf16.mxu0 0
    %1066 = vmatmul.mubr.bf16.gmra.mrb[0].mxu0 %v229
    %v1067 = vpop.f32.mrb[0].mxu0
    %v1068 = vadd.f32 %v692, %v1067
    %v1069 = vpop.f32.mrb[0].mxu0
    %v1070 = vpop.f32.mrb[0].mxu0
    %v1071 = vadd.f32 %v692, %v1070
    %v1072 = vpop.f32.mrb[0].mxu0
    %1073 = vmatprep.mubr.bf16.mxu0 0
    %1074 = vmatmul.mubr.bf16.gmra.mrb[0].mxu0 %v232
    %v1075 = vpop.f32.mrb[0].mxu0
    %v1076 = vadd.f32 %v692, %v1075
    %v1077 = vpop.f32.mrb[0].mxu0
    %v1078 = vpop.f32.mrb[0].mxu0
    %v1079 = vadd.f32 %v692, %v1078
    %v1080 = vpop.f32.mrb[0].mxu0
    %1081 = vmatprep.mubr.bf16.mxu0 0
    %1082 = vmatmul.mubr.bf16.gmra.mrb[0].mxu0 %v235
    %v1083 = vpop.f32.mrb[0].mxu0
    %v1084 = vadd.f32 %v692, %v1083
    %v1085 = vpop.f32.mrb[0].mxu0
    %v1086 = vpop.f32.mrb[0].mxu0
    %v1087 = vadd.f32 %v692, %v1086
    %v1088 = vpop.f32.mrb[0].mxu0
    %1089 = vmatprep.mubr.bf16.mxu0 0
    %1090 = vmatmul.mubr.bf16.gmra.mrb[0].mxu0 %v238
    %v1091 = vpop.f32.mrb[0].mxu0
    %v1092 = vadd.f32 %v692, %v1091
    %v1093 = vpop.f32.mrb[0].mxu0
    %v1094 = vpop.f32.mrb[0].mxu0
    %v1095 = vadd.f32 %v692, %v1094
    %v1096 = vpop.f32.mrb[0].mxu0
    %1097 = vmatprep.mubr.bf16.mxu0 0
    %1098 = vmatmul.mubr.bf16.gmra.mrb[0].mxu0 %v241
    %v1099 = vpop.f32.mrb[0].mxu0
    %v1100 = vadd.f32 %v692, %v1099
    %v1101 = vpop.f32.mrb[0].mxu0
    %v1102 = vpop.f32.mrb[0].mxu0
    %v1103 = vadd.f32 %v692, %v1102
    %v1104 = vpop.f32.mrb[0].mxu0
    %1105 = vmatprep.mubr.bf16.mxu0 0
    %1106 = vmatmul.mubr.bf16.gmra.mrb[0].mxu0 %v244
    %v1107 = vpop.f32.mrb[0].mxu0
    %v1108 = vadd.f32 %v692, %v1107
    %v1109 = vpop.f32.mrb[0].mxu0
    %v1110 = vpop.f32.mrb[0].mxu0
    %v1111 = vadd.f32 %v692, %v1110
    %v1112 = vpop.f32.mrb[0].mxu0
    %1113 = vdwg.mxu0
    %v1114 = vpack.c.bf16 %v799, %v795
    %v1115 = vpack.c.bf16 %v801, %v797
    %v1116 = vpack.c.bf16 %v991, %v988
    %v1117 = vpack.c.bf16 %v809, %v805
    %v1118 = vpack.c.bf16 %v811, %v807
    %v1119 = vpack.c.bf16 %v999, %v996
    %v1120 = vpack.c.bf16 %v819, %v815
    %v1121 = vpack.c.bf16 %v821, %v817
    %v1122 = vpack.c.bf16 %v1007, %v1004
    %v1123 = vpack.c.bf16 %v829, %v825
    %v1124 = vpack.c.bf16 %v831, %v827
    %v1125 = vpack.c.bf16 %v1015, %v1012
    %v1126 = vpack.c.bf16 %v839, %v835
    %v1127 = vpack.c.bf16 %v841, %v837
    %v1128 = vpack.c.bf16 %v1023, %v1020
    %v1129 = vpack.c.bf16 %v849, %v845
    %v1130 = vpack.c.bf16 %v851, %v847
    %v1131 = vpack.c.bf16 %v1031, %v1028
    %v1132 = vpack.c.bf16 %v859, %v855
    %v1133 = vpack.c.bf16 %v861, %v857
    %v1134 = vpack.c.bf16 %v1039, %v1036
    %v1135 = vpack.c.bf16 %v869, %v865
    %v1136 = vpack.c.bf16 %v871, %v867
    %v1137 = vpack.c.bf16 %v1047, %v1044
    %v1138 = vpack.c.bf16 %v879, %v875
    %v1139 = vpack.c.bf16 %v881, %v877
    %v1140 = vpack.c.bf16 %v1055, %v1052
    %v1141 = vpack.c.bf16 %v889, %v885
    %v1142 = vpack.c.bf16 %v891, %v887
    %v1143 = vpack.c.bf16 %v1063, %v1060
    %v1144 = vpack.c.bf16 %v899, %v895
    %v1145 = vpack.c.bf16 %v901, %v897
    %v1146 = vpack.c.bf16 %v1071, %v1068
    %v1147 = vpack.c.bf16 %v909, %v905
    %v1148 = vpack.c.bf16 %v911, %v907
    %v1149 = vpack.c.bf16 %v1079, %v1076
    %v1150 = vpack.c.bf16 %v919, %v915
    %v1151 = vpack.c.bf16 %v921, %v917
    %v1152 = vpack.c.bf16 %v1087, %v1084
    %v1153 = vpack.c.bf16 %v929, %v925
    %v1154 = vpack.c.bf16 %v931, %v927
    %v1155 = vpack.c.bf16 %v1095, %v1092
    %v1156 = vpack.c.bf16 %v939, %v935
    %v1157 = vpack.c.bf16 %v941, %v937
    %v1158 = vpack.c.bf16 %v1103, %v1100
    %v1159 = vpack.c.bf16 %v949, %v945
    %v1160 = vpack.c.bf16 %v951, %v947
    %v1161 = vpack.c.bf16 %v1111, %v1108
    %v1210 = vunpack.c.l.b16 %v1114
    %v1211 = vunpack.c.l.b16 %v1115
    %v1212 = vunpack.c.l.b16 %v1116
    %v1213 = vunpack.c.h.b16 %v1114
    %v1214 = vunpack.c.h.b16 %v1115
    %v1215 = vunpack.c.h.b16 %v1116
    %v1216 = vunpack.c.l.b16 %v1117
    %v1217 = vunpack.c.l.b16 %v1118
    %v1218 = vunpack.c.l.b16 %v1119
    %v1219 = vunpack.c.h.b16 %v1117
    %v1220 = vunpack.c.h.b16 %v1118
    %v1221 = vunpack.c.h.b16 %v1119
    %v1222 = vunpack.c.l.b16 %v1120
    %v1223 = vunpack.c.l.b16 %v1121
    %v1224 = vunpack.c.l.b16 %v1122
    %v1225 = vunpack.c.h.b16 %v1120
    %v1226 = vunpack.c.h.b16 %v1121
    %v1227 = vunpack.c.h.b16 %v1122
    %v1228 = vunpack.c.l.b16 %v1123
    %v1229 = vunpack.c.l.b16 %v1124
    %v1230 = vunpack.c.l.b16 %v1125
    %v1231 = vunpack.c.h.b16 %v1123
    %v1232 = vunpack.c.h.b16 %v1124
    %v1233 = vunpack.c.h.b16 %v1125
    %v1234 = vunpack.c.l.b16 %v1126
    %v1235 = vunpack.c.l.b16 %v1127
    %v1236 = vunpack.c.l.b16 %v1128
    %v1237 = vunpack.c.h.b16 %v1126
    %v1238 = vunpack.c.h.b16 %v1127
    %v1239 = vunpack.c.h.b16 %v1128
    %v1240 = vunpack.c.l.b16 %v1129
    %v1241 = vunpack.c.l.b16 %v1130
    %v1242 = vunpack.c.l.b16 %v1131
    %v1243 = vunpack.c.h.b16 %v1129
    %v1244 = vunpack.c.h.b16 %v1130
    %v1245 = vunpack.c.h.b16 %v1131
    %v1246 = vunpack.c.l.b16 %v1132
    %v1247 = vunpack.c.l.b16 %v1133
    %v1248 = vunpack.c.l.b16 %v1134
    %v1249 = vunpack.c.h.b16 %v1132
    %v1250 = vunpack.c.h.b16 %v1133
    %v1251 = vunpack.c.h.b16 %v1134
    %v1252 = vunpack.c.l.b16 %v1135
    %v1253 = vunpack.c.l.b16 %v1136
    %v1254 = vunpack.c.l.b16 %v1137
    %v1255 = vunpack.c.h.b16 %v1135
    %v1256 = vunpack.c.h.b16 %v1136
    %v1257 = vunpack.c.h.b16 %v1137
    %v1258 = vunpack.c.l.b16 %v1138
    %v1259 = vunpack.c.l.b16 %v1139
    %v1260 = vunpack.c.l.b16 %v1140
    %v1261 = vunpack.c.h.b16 %v1138
    %v1262 = vunpack.c.h.b16 %v1139
    %v1263 = vunpack.c.h.b16 %v1140
    %v1264 = vunpack.c.l.b16 %v1141
    %v1265 = vunpack.c.l.b16 %v1142
    %v1266 = vunpack.c.l.b16 %v1143
    %v1267 = vunpack.c.h.b16 %v1141
    %v1268 = vunpack.c.h.b16 %v1142
    %v1269 = vunpack.c.h.b16 %v1143
    %v1270 = vunpack.c.l.b16 %v1144
    %v1271 = vunpack.c.l.b16 %v1145
    %v1272 = vunpack.c.l.b16 %v1146
    %v1273 = vunpack.c.h.b16 %v1144
    %v1274 = vunpack.c.h.b16 %v1145
    %v1275 = vunpack.c.h.b16 %v1146
    %v1276 = vunpack.c.l.b16 %v1147
    %v1277 = vunpack.c.l.b16 %v1148
    %v1278 = vunpack.c.l.b16 %v1149
    %v1279 = vunpack.c.h.b16 %v1147
    %v1280 = vunpack.c.h.b16 %v1148
    %v1281 = vunpack.c.h.b16 %v1149
    %v1282 = vunpack.c.l.b16 %v1150
    %v1283 = vunpack.c.l.b16 %v1151
    %v1284 = vunpack.c.l.b16 %v1152
    %v1285 = vunpack.c.h.b16 %v1150
    %v1286 = vunpack.c.h.b16 %v1151
    %v1287 = vunpack.c.h.b16 %v1152
    %v1288 = vunpack.c.l.b16 %v1153
    %v1289 = vunpack.c.l.b16 %v1154
    %v1290 = vunpack.c.l.b16 %v1155
    %v1291 = vunpack.c.h.b16 %v1153
    %v1292 = vunpack.c.h.b16 %v1154
    %v1293 = vunpack.c.h.b16 %v1155
    %v1294 = vunpack.c.l.b16 %v1156
    %v1295 = vunpack.c.l.b16 %v1157
    %v1296 = vunpack.c.l.b16 %v1158
    %v1297 = vunpack.c.h.b16 %v1156
    %v1298 = vunpack.c.h.b16 %v1157
    %v1299 = vunpack.c.h.b16 %v1158
    %v1300 = vunpack.c.l.b16 %v1159
    %v1301 = vunpack.c.l.b16 %v1160
    %v1302 = vunpack.c.l.b16 %v1161
    %v1303 = vunpack.c.h.b16 %v1159
    %v1304 = vunpack.c.h.b16 %v1160
    %v1305 = vunpack.c.h.b16 %v1161
    %v1306 = vpack.c.b16 %v1211, %v1210
    %v1307 = vpack.c.b16 %v1212, %v1212
    %v1308 = vpack.c.b16 %v1214, %v1213
    %v1309 = vpack.c.b16 %v1215, %v1215
    %v1310 = vpack.c.b16 %v1217, %v1216
    %v1311 = vpack.c.b16 %v1218, %v1218
    %v1312 = vpack.c.b16 %v1220, %v1219
    %v1313 = vpack.c.b16 %v1221, %v1221
    %v1314 = vpack.c.b16 %v1223, %v1222
    %v1315 = vpack.c.b16 %v1224, %v1224
    %v1316 = vpack.c.b16 %v1226, %v1225
    %v1317 = vpack.c.b16 %v1227, %v1227
    %v1318 = vpack.c.b16 %v1229, %v1228
    %v1319 = vpack.c.b16 %v1230, %v1230
    %v1320 = vpack.c.b16 %v1232, %v1231
    %v1321 = vpack.c.b16 %v1233, %v1233
    %v1322 = vpack.c.b16 %v1235, %v1234
    %v1323 = vpack.c.b16 %v1236, %v1236
    %v1324 = vpack.c.b16 %v1238, %v1237
    %v1325 = vpack.c.b16 %v1239, %v1239
    %v1326 = vpack.c.b16 %v1241, %v1240
    %v1327 = vpack.c.b16 %v1242, %v1242
    %v1328 = vpack.c.b16 %v1244, %v1243
    %v1329 = vpack.c.b16 %v1245, %v1245
    %v1330 = vpack.c.b16 %v1247, %v1246
    %v1331 = vpack.c.b16 %v1248, %v1248
    %v1332 = vpack.c.b16 %v1250, %v1249
    %v1333 = vpack.c.b16 %v1251, %v1251
    %v1334 = vpack.c.b16 %v1253, %v1252
    %v1335 = vpack.c.b16 %v1254, %v1254
    %v1336 = vpack.c.b16 %v1256, %v1255
    %v1337 = vpack.c.b16 %v1257, %v1257
    %v1338 = vpack.c.b16 %v1259, %v1258
    %v1339 = vpack.c.b16 %v1260, %v1260
    %v1340 = vpack.c.b16 %v1262, %v1261
    %v1341 = vpack.c.b16 %v1263, %v1263
    %v1342 = vpack.c.b16 %v1265, %v1264
    %v1343 = vpack.c.b16 %v1266, %v1266
    %v1344 = vpack.c.b16 %v1268, %v1267
    %v1345 = vpack.c.b16 %v1269, %v1269
    %v1346 = vpack.c.b16 %v1271, %v1270
    %v1347 = vpack.c.b16 %v1272, %v1272
    %v1348 = vpack.c.b16 %v1274, %v1273
    %v1349 = vpack.c.b16 %v1275, %v1275
    %v1350 = vpack.c.b16 %v1277, %v1276
    %v1351 = vpack.c.b16 %v1278, %v1278
    %v1352 = vpack.c.b16 %v1280, %v1279
    %v1353 = vpack.c.b16 %v1281, %v1281
    %v1354 = vpack.c.b16 %v1283, %v1282
    %v1355 = vpack.c.b16 %v1284, %v1284
    %v1356 = vpack.c.b16 %v1286, %v1285
    %v1357 = vpack.c.b16 %v1287, %v1287
    %v1358 = vpack.c.b16 %v1289, %v1288
    %v1359 = vpack.c.b16 %v1290, %v1290
    %v1360 = vpack.c.b16 %v1292, %v1291
    %v1361 = vpack.c.b16 %v1293, %v1293
    %v1362 = vpack.c.b16 %v1295, %v1294
    %v1363 = vpack.c.b16 %v1296, %v1296
    %v1364 = vpack.c.b16 %v1298, %v1297
    %v1365 = vpack.c.b16 %v1299, %v1299
    %v1366 = vpack.c.b16 %v1301, %v1300
    %v1367 = vpack.c.b16 %v1302, %v1302
    %v1368 = vpack.c.b16 %v1304, %v1303
    %v1369 = vpack.c.b16 %v1305, %v1305
    %1434 = vst [vmem:[#allocation4] sm:$0xff] %v1306
    %1435 = vst [vmem:[#allocation4 + $0x8] sm:$0xf] %v1307
    %1436 = vst [vmem:[#allocation4 + $0xc] sm:$0xff] %v1308
    %1437 = vst [vmem:[#allocation4 + $0x14] sm:$0xf] %v1309
    %1438 = vst [vmem:[#allocation4 + $0x18] sm:$0xff] %v1310
    %1439 = vst [vmem:[#allocation4 + $0x20] sm:$0xf] %v1311
    %1440 = vst [vmem:[#allocation4 + $0x24] sm:$0xff] %v1312
    %1441 = vst [vmem:[#allocation4 + $0x2c] sm:$0xf] %v1313
    %1442 = vst [vmem:[#allocation4 + $0x30] sm:$0xff] %v1314
    %1443 = vst [vmem:[#allocation4 + $0x38] sm:$0xf] %v1315
    %1444 = vst [vmem:[#allocation4 + $0x3c] sm:$0xff] %v1316
    %1445 = vst [vmem:[#allocation4 + $0x44] sm:$0xf] %v1317
    %1446 = vst [vmem:[#allocation4 + $0x48] sm:$0xff] %v1318
    %1447 = vst [vmem:[#allocation4 + $0x50] sm:$0xf] %v1319
    %1448 = vst [vmem:[#allocation4 + $0x54] sm:$0xff] %v1320
    %1449 = vst [vmem:[#allocation4 + $0x5c] sm:$0xf] %v1321
    %1450 = vst [vmem:[#allocation4 + $0x60] sm:$0xff] %v1322
    %1451 = vst [vmem:[#allocation4 + $0x68] sm:$0xf] %v1323
    %1452 = vst [vmem:[#allocation4 + $0x6c] sm:$0xff] %v1324
    %1453 = vst [vmem:[#allocation4 + $0x74] sm:$0xf] %v1325
    %1454 = vst [vmem:[#allocation4 + $0x78] sm:$0xff] %v1326
    %1455 = vst [vmem:[#allocation4 + $0x80] sm:$0xf] %v1327
    %1456 = vst [vmem:[#allocation4 + $0x84] sm:$0xff] %v1328
    %1457 = vst [vmem:[#allocation4 + $0x8c] sm:$0xf] %v1329
    %1458 = vst [vmem:[#allocation4 + $0x90] sm:$0xff] %v1330
    %1459 = vst [vmem:[#allocation4 + $0x98] sm:$0xf] %v1331
    %1460 = vst [vmem:[#allocation4 + $0x9c] sm:$0xff] %v1332
    %1461 = vst [vmem:[#allocation4 + $0xa4] sm:$0xf] %v1333
    %1462 = vst [vmem:[#allocation4 + $0xa8] sm:$0xff] %v1334
    %1463 = vst [vmem:[#allocation4 + $0xb0] sm:$0xf] %v1335
    %1464 = vst [vmem:[#allocation4 + $0xb4] sm:$0xff] %v1336
    %1465 = vst [vmem:[#allocation4 + $0xbc] sm:$0xf] %v1337
    %1466 = vst [vmem:[#allocation4 + $0xc0] sm:$0xff] %v1338
    %1467 = vst [vmem:[#allocation4 + $0xc8] sm:$0xf] %v1339
    %1468 = vst [vmem:[#allocation4 + $0xcc] sm:$0xff] %v1340
    %1469 = vst [vmem:[#allocation4 + $0xd4] sm:$0xf] %v1341
    %1470 = vst [vmem:[#allocation4 + $0xd8] sm:$0xff] %v1342
    %1471 = vst [vmem:[#allocation4 + $0xe0] sm:$0xf] %v1343
    %1472 = vst [vmem:[#allocation4 + $0xe4] sm:$0xff] %v1344
    %1473 = vst [vmem:[#allocation4 + $0xec] sm:$0xf] %v1345
    %1474 = vst [vmem:[#allocation4 + $0xf0] sm:$0xff] %v1346
    %1475 = vst [vmem:[#allocation4 + $0xf8] sm:$0xf] %v1347
    %1476 = vst [vmem:[#allocation4 + $0xfc] sm:$0xff] %v1348
    %1477 = vst [vmem:[#allocation4 + $0x104] sm:$0xf] %v1349
    %1478 = vst [vmem:[#allocation4 + $0x108] sm:$0xff] %v1350
    %1479 = vst [vmem:[#allocation4 + $0x110] sm:$0xf] %v1351
    %1480 = vst [vmem:[#allocation4 + $0x114] sm:$0xff] %v1352
    %1481 = vst [vmem:[#allocation4 + $0x11c] sm:$0xf] %v1353
    %1482 = vst [vmem:[#allocation4 + $0x120] sm:$0xff] %v1354
    %1483 = vst [vmem:[#allocation4 + $0x128] sm:$0xf] %v1355
    %1484 = vst [vmem:[#allocation4 + $0x12c] sm:$0xff] %v1356
    %1485 = vst [vmem:[#allocation4 + $0x134] sm:$0xf] %v1357
    %1486 = vst [vmem:[#allocation4 + $0x138] sm:$0xff] %v1358
    %1487 = vst [vmem:[#allocation4 + $0x140] sm:$0xf] %v1359
    %1488 = vst [vmem:[#allocation4 + $0x144] sm:$0xff] %v1360
    %1489 = vst [vmem:[#allocation4 + $0x14c] sm:$0xf] %v1361
    %1490 = vst [vmem:[#allocation4 + $0x150] sm:$0xff] %v1362
    %1491 = vst [vmem:[#allocation4 + $0x158] sm:$0xf] %v1363
    %1492 = vst [vmem:[#allocation4 + $0x15c] sm:$0xff] %v1364
    %1493 = vst [vmem:[#allocation4 + $0x164] sm:$0xf] %v1365
    %1494 = vst [vmem:[#allocation4 + $0x168] sm:$0xff] %v1366
    %1495 = vst [vmem:[#allocation4 + $0x170] sm:$0xf] %v1367
    %1496 = vst [vmem:[#allocation4 + $0x174] sm:$0xff] %v1368
    %1497 = vst [vmem:[#allocation4 + $0x17c] sm:$0xf] %v1369
    // Predicated region
    $region22: #{tpu_custom_call.1} parent=1 // pred_check
      _
    $region23: #{tpu_custom_call.1} parent=1 // pred_check_branch
      %1499 = sbr.rel (0) target = $region25
    $region24: #{tpu_custom_call.1} parent=1 // pred_region
      %s1501 = ssub.s32 4096, 4096
      %1502 = vsyncadd [#allocation3], %s1501
      %s1503 = sshll.u32 [#allocation2], 4
      %s1504 = int_to_ptr.vmem [resolvable:$true] %s1503
      %1509 = dma.vmem_to_hbm [thread:$0]  %s1504, 4096, %s5, [#allocation3], 128, 128, 8
    $region25: #{tpu_custom_call.1} parent=1 // pred_fallthru
      _
    // Predicated region
    $region26: #{tpu_custom_call.1} parent=1 // pred_check
      _
    $region27: #{tpu_custom_call.1} parent=1 // pred_check_branch
      %1511 = sbr.rel (0) target = $region29
    $region28: #{tpu_custom_call.1} parent=1 // pred_region
      %s1513 = ssub.s32 6144, 6144
      %1514 = vsyncadd [#allocation5], %s1513
      %s1515 = sshll.u32 [#allocation4], 4
      %s1516 = int_to_ptr.vmem [resolvable:$true] %s1515
      %1521 = dma.vmem_to_hbm [thread:$0]  %s1516, 6144, %s6, [#allocation5], 192, 192, 12
    $region29: #{tpu_custom_call.1} parent=1 // pred_fallthru
      _
    // Predicated region
    $region30: #{tpu_custom_call.1} parent=1 // pred_check
      _
    $region31: #{tpu_custom_call.1} parent=1 // pred_check_branch
      %1523 = sbr.rel (0) target = $region33
    $region32: #{tpu_custom_call.1} parent=1 // pred_region
      %1524 = dma.done [#allocation3], 4096
    $region33: #{tpu_custom_call.1} parent=1 // pred_fallthru
      _
    // Predicated region
    $region34: #{tpu_custom_call.1} parent=1 // pred_check
      _
    $region35: #{tpu_custom_call.1} parent=1 // pred_check_branch
      %1526 = sbr.rel (0) target = $region37
    $region36: #{tpu_custom_call.1} parent=1 // pred_region
      %1527 = dma.done [#allocation5], 6144
    $region37: #{tpu_custom_call.1} parent=1 // pred_fallthru
      _
    %1528 = vsyncpa [#allocation3], 1
    %1529 = vsyncpa [#allocation5], 1

</llo_original>
